<compile_context>
chip_gen: v6e
topology: v6e:2x2x1
jax: 0.10.0
libtpu: 0.0.40
codegen_flags: <defaults>
</compile_context>

<pallas_src>
import functools

import jax
import jax.numpy as jnp
from jax import lax
from jax.experimental import pallas as pl
from jax.experimental.pallas import tpu as pltpu


def _make_conv_kernel(k, dilation, tile_h, w_out, cin, cout, compute_dtype):
    """One H-tile of reflection-padded conv + bias.

    x_ref : (tile_h + 2p, Wp, Cin)  halo'd padded-input rows (compute_dtype)
    w_ref : (k*k*Cin, Cout)         all taps fused along K   (compute_dtype)
    b_ref : (1, Cout)               bias                     (f32)
    o_ref : (tile_h, W, Cout)       output rows              (f32)
    """

    def kernel(x_ref, w_ref, b_ref, o_ref):
        # Full-block load, widened to f32 so the shifted-tap slicing below
        # never hits packed-dtype sublane offsets (keeps the bf16 HBM path safe).
        xb = x_ref[...].astype(jnp.float32)
        taps = []
        for di in range(k):          # static unroll over k*k taps
            for dj in range(k):
                r0 = di * dilation
                c0 = dj * dilation
                t = xb[r0:r0 + tile_h, c0:c0 + w_out, :]
                taps.append(t.reshape(tile_h * w_out, cin))
        # Fuse taps along the contraction dim -> single dot with K = k*k*Cin.
        a = taps[0] if len(taps) == 1 else jnp.concatenate(taps, axis=-1)
        a = a.astype(compute_dtype)
        y = jnp.dot(a, w_ref[...], preferred_element_type=jnp.float32)
        y = y + b_ref[...]            # conv bias (f32)
        o_ref[...] = y.reshape(tile_h, w_out, cout)

    return kernel


def conv_layer_forward(x_nchw, weight_oihw, bias, *, stride=1, dilation=1,
                       tile_h=8, compute_dtype=jnp.float32):
    """ConvLayer.forward: ReflectionPad2d(dilation*(k-1)//2) -> Conv2d -> out (NCHW)."""
    # TODO(synk): stride > 1 would need strided tap slicing; DuRN_P_B only
    # instantiates ConvLayer with stride=1, so it is not implemented here.
    assert stride == 1, "only stride=1 is implemented"
    n, cin, h, w = x_nchw.shape
    cout, cin_w, k, k2 = weight_oihw.shape
    assert cin_w == cin and k == k2
    p = dilation * (k - 1) // 2

    # ---- glue (pure indexing / layout): NCHW -> NHWC + reflection pad ----
    x = jnp.transpose(x_nchw, (0, 2, 3, 1)).astype(jnp.float32)
    xpad = (jnp.pad(x, ((0, 0), (p, p), (p, p), (0, 0)), mode="reflect")
            if p > 0 else x)
    wp = w + 2 * p
    halo = 2 * p

    # H tiling: each grid step produces tile_h output rows and consumes
    # tile_h + 2p padded rows. Halo rows are duplicated tile-wise in the
    # wrapper (only 2p extra rows/tile) so BlockSpec auto-pipelining applies.
    tile_h = max(1, min(tile_h, h))
    while h % tile_h:
        tile_h -= 1
    ht = h // tile_h
    if ht == 1:
        xt = xpad[:, None]
    else:
        xt = jnp.stack([xpad[:, t * tile_h:t * tile_h + tile_h + halo]
                        for t in range(ht)], axis=1)
    xt = xt.astype(compute_dtype)            # (N, HT, tile_h+2p, Wp, Cin)

    # Fused weight: taps ordered (di, dj, cin) to match the in-kernel concat.
    wf = (jnp.transpose(weight_oihw, (2, 3, 1, 0))
          .reshape(k * k * cin, cout).astype(compute_dtype))
    b2 = bias.reshape(1, cout).astype(jnp.float32)

    kernel = _make_conv_kernel(k, dilation, tile_h, w, cin, cout, compute_dtype)
    out_nhwc = pl.pallas_call(
        kernel,
        out_shape=jax.ShapeDtypeStruct((n, h, w, cout), jnp.float32),
        grid=(n, ht),
        in_specs=[
            pl.BlockSpec((None, None, tile_h + halo, wp, cin),
                         lambda i, t: (i, t, 0, 0, 0)),
            pl.BlockSpec((k * k * cin, cout), lambda i, t: (0, 0)),
            pl.BlockSpec((1, cout), lambda i, t: (0, 0)),
        ],
        out_specs=pl.BlockSpec((None, tile_h, w, cout),
                               lambda i, t: (i, t, 0, 0)),
        compiler_params=pltpu.CompilerParams(
            dimension_semantics=("parallel", "parallel")),
    )(xt, wf, b2)
    return jnp.transpose(out_nhwc, (0, 3, 1, 2))


# ---------------- pure-JAX reference (correctness check only) ----------------
def conv_layer_ref(x_nchw, weight_oihw, bias, *, stride=1, dilation=1):
    k = weight_oihw.shape[-1]
    p = dilation * (k - 1) // 2
    xpad = (jnp.pad(x_nchw, ((0, 0), (0, 0), (p, p), (p, p)), mode="reflect")
            if p > 0 else x_nchw)
    y = lax.conv_general_dilated(
        xpad.astype(jnp.float32), weight_oihw.astype(jnp.float32),
        window_strides=(stride, stride), padding="VALID",
        rhs_dilation=(dilation, dilation),
        dimension_numbers=("NCHW", "OIHW", "NCHW"))
    return y + bias.reshape(1, -1, 1, 1)


if __name__ == "__main__":
    key = jax.random.PRNGKey(0)
    kx, kw, kb, kw1, kb1 = jax.random.split(key, 5)

    # ConvLayer(in_dim=32, out_dim=32, kernel_size=3, stride=1) as used in DuRN_P_B.
    n, c, h, w = 2, 32, 16, 16
    x = jax.random.normal(kx, (n, c, h, w), jnp.float32)
    w3 = 0.1 * jax.random.normal(kw, (c, c, 3, 3), jnp.float32)
    b3 = 0.05 * jax.random.normal(kb, (c,), jnp.float32)

    out = jax.jit(conv_layer_forward)(x, w3, b3)
    jax.block_until_ready(out)
    ref = conv_layer_ref(x, w3, b3)
    err = float(jnp.max(jnp.abs(out - ref)))
    assert out.shape == (n, c, h, w), out.shape
    assert err < 1e-3, f"f32 3x3 mismatch vs reference: {err}"

    # 1x1 ConvLayer (the module's k2 path) — exercises the no-pad branch.
    w1 = 0.1 * jax.random.normal(kw1, (c, c, 1, 1), jnp.float32)
    b1 = 0.05 * jax.random.normal(kb1, (c,), jnp.float32)
    out1 = jax.jit(conv_layer_forward)(x, w1, b1)
    jax.block_until_ready(out1)
    err1 = float(jnp.max(jnp.abs(out1 - conv_layer_ref(x, w1, b1))))
    assert err1 < 1e-3, f"f32 1x1 mismatch vs reference: {err1}"

    # bf16 operand path (v6e/v7x MXU-native; accumulation + bias remain f32).
    out_bf16 = jax.jit(functools.partial(conv_layer_forward,
                                         compute_dtype=jnp.bfloat16))(x, w3, b3)
    jax.block_until_ready(out_bf16)
    err_bf16 = float(jnp.max(jnp.abs(out_bf16 - ref)))
    assert err_bf16 < 1e-1, f"bf16 mismatch vs reference: {err_bf16}"

    print("KERNEL_OK")
</pallas_src>

<mosaic_0001>
module attributes {stable_mosaic.version = 11 : i64} {
  func.func @kernel(%arg0: i32, %arg1: i32, %arg2: memref<1x1x10x18x32xf32, #tpu.memory_space<vmem>>, %arg3: memref<288x32xf32, #tpu.memory_space<vmem>>, %arg4: memref<1x32xf32, #tpu.memory_space<vmem>>, %arg5: memref<1x8x16x32xf32, #tpu.memory_space<vmem>>) attributes {dimension_semantics = [#tpu.dimension_semantics<parallel>, #tpu.dimension_semantics<parallel>], iteration_bounds = array<i64: 2, 2>, scalar_prefetch = 0 : i64, scratch_operands = 0 : i64, tpu.core_type = #tpu.core_type<tc>, window_params = [{transform_indices = @transform_0, window_bounds = array<i64: 1, 1, 10, 18, 32>}, {pipeline_mode = #tpu.pipeline_mode<synchronous>, transform_indices = @transform_1, window_bounds = array<i64: 288, 32>}, {pipeline_mode = #tpu.pipeline_mode<synchronous>, transform_indices = @transform_2, window_bounds = array<i64: 1, 32>}, {transform_indices = @transform_3, window_bounds = array<i64: 1, 8, 16, 32>}]} {
    %c0 = arith.constant 0 : index
    %c0_0 = arith.constant 0 : index
    %c0_1 = arith.constant 0 : index
    %c0_2 = arith.constant 0 : index
    %c0_3 = arith.constant 0 : index
    %0 = vector.load %arg2[%c0, %c0_0, %c0_1, %c0_2, %c0_3] : memref<1x1x10x18x32xf32, #tpu.memory_space<vmem>>, vector<1x1x10x18x32xf32>
    %1 = vector.shape_cast %0 : vector<1x1x10x18x32xf32> to vector<10x18x32xf32>
    %2 = vector.extract_strided_slice %1 {offsets = [0, 0, 0], sizes = [8, 16, 32], strides = [1, 1, 1]} : vector<10x18x32xf32> to vector<8x16x32xf32>
    %3 = vector.shape_cast %2 : vector<8x16x32xf32> to vector<128x32xf32>
    %4 = vector.extract_strided_slice %1 {offsets = [0, 1, 0], sizes = [8, 16, 32], strides = [1, 1, 1]} : vector<10x18x32xf32> to vector<8x16x32xf32>
    %5 = vector.shape_cast %4 : vector<8x16x32xf32> to vector<128x32xf32>
    %6 = vector.extract_strided_slice %1 {offsets = [0, 2, 0], sizes = [8, 16, 32], strides = [1, 1, 1]} : vector<10x18x32xf32> to vector<8x16x32xf32>
    %7 = vector.shape_cast %6 : vector<8x16x32xf32> to vector<128x32xf32>
    %8 = vector.extract_strided_slice %1 {offsets = [1, 0, 0], sizes = [8, 16, 32], strides = [1, 1, 1]} : vector<10x18x32xf32> to vector<8x16x32xf32>
    %9 = vector.shape_cast %8 : vector<8x16x32xf32> to vector<128x32xf32>
    %10 = vector.extract_strided_slice %1 {offsets = [1, 1, 0], sizes = [8, 16, 32], strides = [1, 1, 1]} : vector<10x18x32xf32> to vector<8x16x32xf32>
    %11 = vector.shape_cast %10 : vector<8x16x32xf32> to vector<128x32xf32>
    %12 = vector.extract_strided_slice %1 {offsets = [1, 2, 0], sizes = [8, 16, 32], strides = [1, 1, 1]} : vector<10x18x32xf32> to vector<8x16x32xf32>
    %13 = vector.shape_cast %12 : vector<8x16x32xf32> to vector<128x32xf32>
    %14 = vector.extract_strided_slice %1 {offsets = [2, 0, 0], sizes = [8, 16, 32], strides = [1, 1, 1]} : vector<10x18x32xf32> to vector<8x16x32xf32>
    %15 = vector.shape_cast %14 : vector<8x16x32xf32> to vector<128x32xf32>
    %16 = vector.extract_strided_slice %1 {offsets = [2, 1, 0], sizes = [8, 16, 32], strides = [1, 1, 1]} : vector<10x18x32xf32> to vector<8x16x32xf32>
    %17 = vector.shape_cast %16 : vector<8x16x32xf32> to vector<128x32xf32>
    %18 = vector.extract_strided_slice %1 {offsets = [2, 2, 0], sizes = [8, 16, 32], strides = [1, 1, 1]} : vector<10x18x32xf32> to vector<8x16x32xf32>
    %19 = vector.shape_cast %18 : vector<8x16x32xf32> to vector<128x32xf32>
    %20 = tpu.concatenate %3, %5, %7, %9, %11, %13, %15, %17, %19 in 1 : vector<128x32xf32>, vector<128x32xf32>, vector<128x32xf32>, vector<128x32xf32>, vector<128x32xf32>, vector<128x32xf32>, vector<128x32xf32>, vector<128x32xf32>, vector<128x32xf32> -> vector<128x288xf32>
    %c0_4 = arith.constant 0 : index
    %c0_5 = arith.constant 0 : index
    %21 = vector.load %arg3[%c0_4, %c0_5] : memref<288x32xf32, #tpu.memory_space<vmem>>, vector<288x32xf32>
    %cst = arith.constant dense<0.000000e+00> : vector<128x32xf32>
    %22 = tpu.matmul %20, %21, %cst {dimension_numbers = #tpu.dot_dimension_numbers<[1], [0], [0], [1], [0, 0, 1, 1], [], []>} : vector<128x288xf32>, vector<288x32xf32>, vector<128x32xf32> -> vector<128x32xf32>
    %c0_6 = arith.constant 0 : index
    %c0_7 = arith.constant 0 : index
    %23 = vector.load %arg4[%c0_6, %c0_7] : memref<1x32xf32, #tpu.memory_space<vmem>>, vector<1x32xf32>
    %24 = vector.broadcast %23 : vector<1x32xf32> to vector<128x32xf32>
    %25 = arith.addf %22, %24 : vector<128x32xf32>
    %26 = vector.shape_cast %25 : vector<128x32xf32> to vector<8x16x32xf32>
    %c0_8 = arith.constant 0 : index
    %c0_9 = arith.constant 0 : index
    %c0_10 = arith.constant 0 : index
    %c0_11 = arith.constant 0 : index
    %27 = vector.load %arg5[%c0_8, %c0_9, %c0_10, %c0_11] : memref<1x8x16x32xf32, #tpu.memory_space<vmem>>, vector<1x8x16x32xf32>
    %28 = vector.shape_cast %27 : vector<1x8x16x32xf32> to vector<8x16x32xf32>
    %29 = vector.shape_cast %26 : vector<8x16x32xf32> to vector<1x8x16x32xf32>
    tpu.vector_store %arg5[%c0_8, %c0_9, %c0_10, %c0_11], %29 {strides = array<i32>} : memref<1x8x16x32xf32, #tpu.memory_space<vmem>>, vector<1x8x16x32xf32>,
    return
  }
  func.func @transform_0(%arg0: i32, %arg1: i32) -> (i32, i32, i32, i32, i32) {
    %c0_i32 = arith.constant 0 : i32
    %c0_i32_0 = arith.constant 0 : i32
    %c0_i32_1 = arith.constant 0 : i32
    %c0_i32_2 = arith.constant 0 : i32
    return %arg0, %arg1, %c0_i32, %c0_i32_0, %c0_i32_1 : i32, i32, i32, i32, i32
  }
  func.func @transform_1(%arg0: i32, %arg1: i32) -> (i32, i32) {
    %c0_i32 = arith.constant 0 : i32
    %c0_i32_0 = arith.constant 0 : i32
    %c0_i32_1 = arith.constant 0 : i32
    return %c0_i32, %c0_i32_0 : i32, i32
  }
  func.func @transform_2(%arg0: i32, %arg1: i32) -> (i32, i32) {
    %c0_i32 = arith.constant 0 : i32
    %c0_i32_0 = arith.constant 0 : i32
    %c0_i32_1 = arith.constant 0 : i32
    return %c0_i32, %c0_i32_0 : i32, i32
  }
  func.func @transform_3(%arg0: i32, %arg1: i32) -> (i32, i32, i32, i32) {
    %c0_i32 = arith.constant 0 : i32
    %c0_i32_0 = arith.constant 0 : i32
    %c0_i32_1 = arith.constant 0 : i32
    return %arg0, %arg1, %c0_i32, %c0_i32_0 : i32, i32, i32, i32
  }
}

</mosaic_0001>

<llo_original>
// kernel: conv_layer_forward.1
$region0: #{conv_layer_forward.1}
  #allocation0 [shape = 'u32[]', space=smem, size = 0x4, offset = 0x4, fixed_abs, tag = 'smem constant byte address 0x4 - core index']
  #allocation1 [shape = 'u32[144,128]{1,0:T(1,128)}', space=vmem, size = 0x12000, scoped, tag = 'internal scratch']
  %s0 = inlined_call_operand.vmem [shape: f32[2,2,10,18,32], index: 0, kind: input, shape index: {}]
  %s1 = inlined_call_operand.vmem [shape: f32[288,32], index: 1, kind: input, shape index: {}]
  %s2 = inlined_call_operand.vmem [shape: f32[1,32], index: 2, kind: input, shape index: {}]
  %s3 = inlined_call_operand.hbm [shape: f32[2,16,16,32], index: 3, kind: output, shape index: {}]
  %s4 = sld [smem:[#allocation0]]
  $region45: #{conv_layer_forward.1} parent=0
    _
  %s6 = ssub.s32 1, %s4
  %s7 = scalar_select 0, %s6, %s4
  $region1: #{conv_layer_forward.1} parent=0
    #allocation2 [shape = 'u8[131072]{0}', space=vmem, size = 0x20000, scoped, tag = 'output window, operand 0']
    #allocation3 [shape = 's32[2]{0}', space=sflag, size = 0x8, scoped, tag = 'scoped memory for conv_layer_forward.1']
    %8 = vsyncpa [#allocation3], 0
    %s9 = scalar_lea.sflag [#allocation3], 1
    %10 = vsyncpa %s9, 0
    loop: start=0, step=1, limit=6
    $region2: #{conv_layer_forward.1} parent=1 // loop_pre_header
      _
    $region3: #{conv_layer_forward.1} parent=1 // loop_header
      %s12 = sphi 0, %s16
      %p13 = scmp.ge.s32.totalorder %s12, 6
      %s19 = sphi 0, %s31
      %s20 = sphi 0, %s27
      %s21 = sphi 0, %s19
      %s22 = sphi 0, %s20
      %s23 = sphi 0, %s21
      %s24 = sphi 0, %s22
      %s36 = sphi 0, %s38
      %s39 = sphi 0, %s36
      %s40 = sphi 0, %s39
      %s56 = sphi 0, %s40
      %s60 = sphi 0, %s60
      %s62 = sphi 0, %s60
      %s63 = sphi 0, %s62
      %s77 = sphi 0, %s63
      %s81 = sphi 0, %s81
      %s83 = sphi 0, %s81
      %s84 = sphi 0, %s83
      %s98 = sphi 0, %s84
      %s106 = sphi 0, %s108
      %s109 = sphi 0, %s106
      %s110 = sphi 0, %s109
      %s126 = sphi 0, %s110
    $region4: #{conv_layer_forward.1} parent=1 // loop_header_branch
      %15 = sbr.rel (%p13) target = $region8
    $region5: #{conv_layer_forward.1} parent=1 // loop_body
      %s17 = ssub.s32 %s12, 1
      %s18 = ssub.s32 %s12, 2
      %s25 = sadd.s32 1, %s20
      %p26 = scmp.ge.s32.totalorder %s25, 2
      %s27 = scalar_select %p26, 0, %s25
      %s28 = sadd.s32 1, %s19
      %s29 = scalar_select %p26, %s28, %s19
      %p30 = scmp.ge.s32.totalorder %s29, 2
      %s31 = scalar_select %p30, 0, %s29
      %s32 = ssub.s32 %s19, %s31
      %s33 = ssub.s32 %s20, %s27
      %s34 = sor.u32 %s32, %s33
      %p35 = scmp.eq.s32.totalorder %s34, 0
      %s37 = sadd.s32 %s36, 1
      %s38 = scalar_select %p35, %s36, %s37
      %p41 = pneg %p35
      %p42 = scmp.eq.s32.totalorder %s12, 3
      %p43 = por %p41, %p42
      %p44 = scmp.ne.s32.totalorder %s36, %s39
      %p45 = scmp.eq.s32.totalorder %s12, 0
      %p46 = por %p44, %p45
      %p47 = scmp.ne.s32.totalorder %s36, %s39
      %p48 = scmp.eq.s32.totalorder %s17, 3
      %p49 = por %p47, %p48
      %p50 = scmp.ne.s32.totalorder %s39, %s40
      %p51 = scmp.eq.s32.totalorder %s17, 0
      %p52 = por %p50, %p51
      %p53 = scmp.ne.s32.totalorder %s39, %s40
      %p54 = scmp.eq.s32.totalorder %s18, 3
      %p55 = por %p53, %p54
      %p57 = scmp.ne.s32.totalorder %s40, %s56
      %p58 = scmp.eq.s32.totalorder %s18, 0
      %p59 = por %p57, %p58
      %s61 = sadd.s32 %s60, 1
      %p64 = scmp.eq.s32.totalorder %s12, 3
      %p65 = scmp.ne.s32.totalorder %s60, %s62
      %p66 = scmp.eq.s32.totalorder %s12, 0
      %p67 = por %p65, %p66
      %p68 = scmp.ne.s32.totalorder %s60, %s62
      %p69 = scmp.eq.s32.totalorder %s17, 3
      %p70 = por %p68, %p69
      %p71 = scmp.ne.s32.totalorder %s62, %s63
      %p72 = scmp.eq.s32.totalorder %s17, 0
      %p73 = por %p71, %p72
      %p74 = scmp.ne.s32.totalorder %s62, %s63
      %p75 = scmp.eq.s32.totalorder %s18, 3
      %p76 = por %p74, %p75
      %p78 = scmp.ne.s32.totalorder %s63, %s77
      %p79 = scmp.eq.s32.totalorder %s18, 0
      %p80 = por %p78, %p79
      %s82 = sadd.s32 %s81, 1
      %p85 = scmp.eq.s32.totalorder %s12, 3
      %p86 = scmp.ne.s32.totalorder %s81, %s83
      %p87 = scmp.eq.s32.totalorder %s12, 0
      %p88 = por %p86, %p87
      %p89 = scmp.ne.s32.totalorder %s81, %s83
      %p90 = scmp.eq.s32.totalorder %s17, 3
      %p91 = por %p89, %p90
      %p92 = scmp.ne.s32.totalorder %s83, %s84
      %p93 = scmp.eq.s32.totalorder %s17, 0
      %p94 = por %p92, %p93
      %p95 = scmp.ne.s32.totalorder %s83, %s84
      %p96 = scmp.eq.s32.totalorder %s18, 3
      %p97 = por %p95, %p96
      %p99 = scmp.ne.s32.totalorder %s84, %s98
      %p100 = scmp.eq.s32.totalorder %s18, 0
      %p101 = por %p99, %p100
      %s102 = ssub.s32 %s19, %s31
      %s103 = ssub.s32 %s20, %s27
      %s104 = sor.u32 %s102, %s103
      %p105 = scmp.eq.s32.totalorder %s104, 0
      %s107 = sadd.s32 %s106, 1
      %s108 = scalar_select %p105, %s106, %s107
      %p111 = pneg %p105
      %p112 = scmp.eq.s32.totalorder %s12, 3
      %p113 = por %p111, %p112
      %p114 = scmp.ne.s32.totalorder %s106, %s109
      %p115 = scmp.eq.s32.totalorder %s12, 0
      %p116 = por %p114, %p115
      %p117 = scmp.ne.s32.totalorder %s106, %s109
      %p118 = scmp.eq.s32.totalorder %s17, 3
      %p119 = por %p117, %p118
      %p120 = scmp.ne.s32.totalorder %s109, %s110
      %p121 = scmp.eq.s32.totalorder %s17, 0
      %p122 = por %p120, %p121
      %p123 = scmp.ne.s32.totalorder %s109, %s110
      %p124 = scmp.eq.s32.totalorder %s18, 3
      %p125 = por %p123, %p124
      %p127 = scmp.ne.s32.totalorder %s110, %s126
      %p128 = scmp.eq.s32.totalorder %s18, 0
      %p129 = por %p127, %p128
      %p130 = scmp.le.s32.totalorder 1, %s12
      %p131 = scmp.lt.s32.totalorder %s12, 5
      %p132 = pnand %p130, %p131
      %p133 = pneg %p132
      // Predicated region
      $region9: #{conv_layer_forward.1} parent=5 // pred_check
        _
      $region10: #{conv_layer_forward.1} parent=5 // pred_check_branch
        %135 = sbr.rel (%p132) target = $region12
      $region11: #{conv_layer_forward.1} parent=5 // pred_region
        %s136 = ssub.s32 %s12, 1
        // Predicated region
        $region13: #{conv_layer_forward.1} parent=11 // pred_check
          %p137 = pneg %p73
        $region14: #{conv_layer_forward.1} parent=11 // pred_check_branch
          %139 = sbr.rel (%p137) target = $region16
        $region15: #{conv_layer_forward.1} parent=11 // pred_region
          _
        $region16: #{conv_layer_forward.1} parent=11 // pred_fallthru
          _
        // Predicated region
        $region17: #{conv_layer_forward.1} parent=11 // pred_check
          %p140 = pneg %p94
        $region18: #{conv_layer_forward.1} parent=11 // pred_check_branch
          %142 = sbr.rel (%p140) target = $region20
        $region19: #{conv_layer_forward.1} parent=11 // pred_region
          _
        $region20: #{conv_layer_forward.1} parent=11 // pred_fallthru
          _
      $region12: #{conv_layer_forward.1} parent=5 // pred_fallthru
        _
      %p143 = scmp.lt.s32.totalorder %s12, 4
      // Predicated region
      $region21: #{conv_layer_forward.1} parent=5 // pred_check
        %p144 = pneg %p143
      $region22: #{conv_layer_forward.1} parent=5 // pred_check_branch
        %146 = sbr.rel (%p144) target = $region24
      $region23: #{conv_layer_forward.1} parent=5 // pred_region
        // Predicated region
        $region25: #{conv_layer_forward.1} parent=23 // pred_check
          %p147 = pneg %p46
        $region26: #{conv_layer_forward.1} parent=23 // pred_check_branch
          %149 = sbr.rel (%p147) target = $region28
        $region27: #{conv_layer_forward.1} parent=23 // pred_region
          %p150 = scmp.lt.s32.totalorder %s19, 1
          %s151 = scalar_select %p150, %s19, 1
          %p152 = scmp.lt.s32.totalorder %s20, 1
          %s153 = scalar_select %p152, %s20, 1
          %s154 = smul.addr %s153, 30
          %s155 = smul.addr %s151, 60
          %s156 = sadd.s32 %s154, %s155
          %s157 = smul.addr %s156, 8
          %s158 = scalar_lea.vmem %s0, %s157
        $region28: #{conv_layer_forward.1} parent=23 // pred_fallthru
          _
      $region24: #{conv_layer_forward.1} parent=5 // pred_fallthru
        _
      %p159 = scmp.le.s32.totalorder 1, %s12
      %p160 = scmp.lt.s32.totalorder %s12, 5
      %p161 = pnand %p159, %p160
      %p162 = pneg %p161
      // Predicated region
      $region29: #{conv_layer_forward.1} parent=5 // pred_check
        _
      $region30: #{conv_layer_forward.1} parent=5 // pred_check_branch
        %164 = sbr.rel (%p161) target = $region32
      $region31: #{conv_layer_forward.1} parent=5 // pred_region
        %s165 = ssub.s32 %s12, 1
        %p166 = scmp.lt.s32.totalorder %s21, 1
        %s167 = scalar_select %p166, %s21, 1
        %p168 = scmp.lt.s32.totalorder %s22, 1
        %s169 = scalar_select %p168, %s22, 1
        %s170 = smul.addr %s169, 30
        %s171 = smul.addr %s167, 60
        %s172 = sadd.s32 %s170, %s171
        %s173 = smul.addr %s172, 8
        %s174 = scalar_lea.vmem %s0, %s173
        %p175 = pneg %p52
        %p176 = pneg %p49
        %p177 = pneg %p73
        %p178 = pneg %p70
        %p179 = pneg %p94
        %p180 = pneg %p91
        %p181 = pneg %p122
        %p182 = pneg %p119
        %s183 = sand.u32 %s109, 1
        %s184 = scalar_lea.sflag [#allocation3], %s183
        %s185 = sand.u32 %s109, 1
        %s186 = smul.addr %s185, 128
        %s187 = scalar_lea.vmem [#allocation2], %s186
        %p188 = scmp.lt.s32.totalorder %s21, 1
        %s189 = scalar_select %p188, %s21, 1
        %p190 = scmp.lt.s32.totalorder %s22, 1
        %s191 = scalar_select %p190, %s22, 1
        %s192 = smul.addr %s191, 30
        %s193 = smul.addr %s189, 60
        %s194 = sadd.s32 %s192, %s193
        %s195 = smul.addr %s194, 8
        %s196 = scalar_lea.vmem %s0, %s195
        %s197 = smul.u32 8, %s22
        %v198 = vld [vmem:[%s196] sm:$0xff]
        %v199 = vld [vmem:[%s196 + $0x8] sm:$0xff]
        %v200 = vld [vmem:[%s196 + $0x10] sm:$0x3]
        %v201 = vld [vmem:[%s196 + $0x18] sm:$0xff]
        %v202 = vld [vmem:[%s196 + $0x20] sm:$0xff]
        %v203 = vld [vmem:[%s196 + $0x28] sm:$0x3]
        %v204 = vld [vmem:[%s196 + $0x30] sm:$0xff]
        %v205 = vld [vmem:[%s196 + $0x38] sm:$0xff]
        %v206 = vld [vmem:[%s196 + $0x40] sm:$0x3]
        %v207 = vld [vmem:[%s196 + $0x48] sm:$0xff]
        %v208 = vld [vmem:[%s196 + $0x50] sm:$0xff]
        %v209 = vld [vmem:[%s196 + $0x58] sm:$0x3]
        %v210 = vld [vmem:[%s196 + $0x60] sm:$0xff]
        %v211 = vld [vmem:[%s196 + $0x68] sm:$0xff]
        %v212 = vld [vmem:[%s196 + $0x70] sm:$0x3]
        %v213 = vld [vmem:[%s196 + $0x78] sm:$0xff]
        %v214 = vld [vmem:[%s196 + $0x80] sm:$0xff]
        %v215 = vld [vmem:[%s196 + $0x88] sm:$0x3]
        %v216 = vld [vmem:[%s196 + $0x90] sm:$0xff]
        %v217 = vld [vmem:[%s196 + $0x98] sm:$0xff]
        %v218 = vld [vmem:[%s196 + $0xa0] sm:$0x3]
        %v219 = vld [vmem:[%s196 + $0xa8] sm:$0xff]
        %v220 = vld [vmem:[%s196 + $0xb0] sm:$0xff]
        %v221 = vld [vmem:[%s196 + $0xb8] sm:$0x3]
        %v222 = vld [vmem:[%s196 + $0xc0] sm:$0xff]
        %v223 = vld [vmem:[%s196 + $0xc8] sm:$0xff]
        %v224 = vld [vmem:[%s196 + $0xd0] sm:$0x3]
        %v225 = vld [vmem:[%s196 + $0xd8] sm:$0xff]
        %v226 = vld [vmem:[%s196 + $0xe0] sm:$0xff]
        %v227 = vld [vmem:[%s196 + $0xe8] sm:$0x3]
        %vm252 = vcmask 1046528
        %v253 = vrot.slane %v198, 1
        %v254 = vrot.slane %v199, 1
        %v255 = vsel %vm252, %v253, %v254
        %v256 = vrot.slane %v200, 1
        %v257 = vsel %vm252, %v254, %v256
        %v258 = vrot.slane %v201, 1
        %v259 = vrot.slane %v202, 1
        %v260 = vsel %vm252, %v258, %v259
        %v261 = vrot.slane %v203, 1
        %v262 = vsel %vm252, %v259, %v261
        %v263 = vrot.slane %v204, 1
        %v264 = vrot.slane %v205, 1
        %v265 = vsel %vm252, %v263, %v264
        %v266 = vrot.slane %v206, 1
        %v267 = vsel %vm252, %v264, %v266
        %v268 = vrot.slane %v207, 1
        %v269 = vrot.slane %v208, 1
        %v270 = vsel %vm252, %v268, %v269
        %v271 = vrot.slane %v209, 1
        %v272 = vsel %vm252, %v269, %v271
        %v273 = vrot.slane %v210, 1
        %v274 = vrot.slane %v211, 1
        %v275 = vsel %vm252, %v273, %v274
        %v276 = vrot.slane %v212, 1
        %v277 = vsel %vm252, %v274, %v276
        %v278 = vrot.slane %v213, 1
        %v279 = vrot.slane %v214, 1
        %v280 = vsel %vm252, %v278, %v279
        %v281 = vrot.slane %v215, 1
        %v282 = vsel %vm252, %v279, %v281
        %v283 = vrot.slane %v216, 1
        %v284 = vrot.slane %v217, 1
        %v285 = vsel %vm252, %v283, %v284
        %v286 = vrot.slane %v218, 1
        %v287 = vsel %vm252, %v284, %v286
        %v288 = vrot.slane %v219, 1
        %v289 = vrot.slane %v220, 1
        %v290 = vsel %vm252, %v288, %v289
        %v291 = vrot.slane %v221, 1
        %v292 = vsel %vm252, %v289, %v291
        %vm293 = vcmask 1045504
        %v294 = vrot.slane %v198, 2
        %v295 = vrot.slane %v199, 2
        %v296 = vsel %vm293, %v294, %v295
        %v297 = vrot.slane %v200, 2
        %v298 = vsel %vm293, %v295, %v297
        %v299 = vrot.slane %v201, 2
        %v300 = vrot.slane %v202, 2
        %v301 = vsel %vm293, %v299, %v300
        %v302 = vrot.slane %v203, 2
        %v303 = vsel %vm293, %v300, %v302
        %v304 = vrot.slane %v204, 2
        %v305 = vrot.slane %v205, 2
        %v306 = vsel %vm293, %v304, %v305
        %v307 = vrot.slane %v206, 2
        %v308 = vsel %vm293, %v305, %v307
        %v309 = vrot.slane %v207, 2
        %v310 = vrot.slane %v208, 2
        %v311 = vsel %vm293, %v309, %v310
        %v312 = vrot.slane %v209, 2
        %v313 = vsel %vm293, %v310, %v312
        %v314 = vrot.slane %v210, 2
        %v315 = vrot.slane %v211, 2
        %v316 = vsel %vm293, %v314, %v315
        %v317 = vrot.slane %v212, 2
        %v318 = vsel %vm293, %v315, %v317
        %v319 = vrot.slane %v213, 2
        %v320 = vrot.slane %v214, 2
        %v321 = vsel %vm293, %v319, %v320
        %v322 = vrot.slane %v215, 2
        %v323 = vsel %vm293, %v320, %v322
        %v324 = vrot.slane %v216, 2
        %v325 = vrot.slane %v217, 2
        %v326 = vsel %vm293, %v324, %v325
        %v327 = vrot.slane %v218, 2
        %v328 = vsel %vm293, %v325, %v327
        %v329 = vrot.slane %v219, 2
        %v330 = vrot.slane %v220, 2
        %v331 = vsel %vm293, %v329, %v330
        %v332 = vrot.slane %v221, 2
        %v333 = vsel %vm293, %v330, %v332
        %v337 = vrot.slane %v222, 1
        %v338 = vrot.slane %v223, 1
        %v339 = vsel %vm252, %v337, %v338
        %v340 = vrot.slane %v224, 1
        %v341 = vsel %vm252, %v338, %v340
        %v358 = vrot.slane %v222, 2
        %v359 = vrot.slane %v223, 2
        %v360 = vsel %vm293, %v358, %v359
        %v361 = vrot.slane %v224, 2
        %v362 = vsel %vm293, %v359, %v361
        %v366 = vrot.slane %v225, 1
        %v367 = vrot.slane %v226, 1
        %v368 = vsel %vm252, %v366, %v367
        %v369 = vrot.slane %v227, 1
        %v370 = vsel %vm252, %v367, %v369
        %v371 = vrot.slane %v225, 2
        %v372 = vrot.slane %v226, 2
        %v373 = vsel %vm293, %v371, %v372
        %v374 = vrot.slane %v227, 2
        %v375 = vsel %vm293, %v372, %v374
        %376 = vrot.lane.b32.xlu0 %v255, 32
        %v377 = vpop.permute.xlu0 %376
        %378 = vrot.lane.b32.xlu0 %v257, 32
        %v379 = vpop.permute.xlu0 %378
        %380 = vrot.lane.b32.xlu0 %v260, 32
        %v381 = vpop.permute.xlu0 %380
        %382 = vrot.lane.b32.xlu0 %v262, 32
        %v383 = vpop.permute.xlu0 %382
        %384 = vrot.lane.b32.xlu0 %v265, 32
        %v385 = vpop.permute.xlu0 %384
        %386 = vrot.lane.b32.xlu0 %v267, 32
        %v387 = vpop.permute.xlu0 %386
        %388 = vrot.lane.b32.xlu0 %v270, 32
        %v389 = vpop.permute.xlu0 %388
        %390 = vrot.lane.b32.xlu0 %v272, 32
        %v391 = vpop.permute.xlu0 %390
        %392 = vrot.lane.b32.xlu0 %v275, 32
        %v393 = vpop.permute.xlu0 %392
        %394 = vrot.lane.b32.xlu0 %v277, 32
        %v395 = vpop.permute.xlu0 %394
        %396 = vrot.lane.b32.xlu0 %v280, 32
        %v397 = vpop.permute.xlu0 %396
        %398 = vrot.lane.b32.xlu0 %v282, 32
        %v399 = vpop.permute.xlu0 %398
        %400 = vrot.lane.b32.xlu0 %v285, 32
        %v401 = vpop.permute.xlu0 %400
        %402 = vrot.lane.b32.xlu0 %v287, 32
        %v403 = vpop.permute.xlu0 %402
        %404 = vrot.lane.b32.xlu0 %v290, 32
        %v405 = vpop.permute.xlu0 %404
        %406 = vrot.lane.b32.xlu0 %v292, 32
        %v407 = vpop.permute.xlu0 %406
        %424 = vrot.lane.b32.xlu0 %v296, 64
        %v425 = vpop.permute.xlu0 %424
        %426 = vrot.lane.b32.xlu0 %v298, 64
        %v427 = vpop.permute.xlu0 %426
        %428 = vrot.lane.b32.xlu0 %v301, 64
        %v429 = vpop.permute.xlu0 %428
        %430 = vrot.lane.b32.xlu0 %v303, 64
        %v431 = vpop.permute.xlu0 %430
        %432 = vrot.lane.b32.xlu0 %v306, 64
        %v433 = vpop.permute.xlu0 %432
        %434 = vrot.lane.b32.xlu0 %v308, 64
        %v435 = vpop.permute.xlu0 %434
        %436 = vrot.lane.b32.xlu0 %v311, 64
        %v437 = vpop.permute.xlu0 %436
        %438 = vrot.lane.b32.xlu0 %v313, 64
        %v439 = vpop.permute.xlu0 %438
        %440 = vrot.lane.b32.xlu0 %v316, 64
        %v441 = vpop.permute.xlu0 %440
        %442 = vrot.lane.b32.xlu0 %v318, 64
        %v443 = vpop.permute.xlu0 %442
        %444 = vrot.lane.b32.xlu0 %v321, 64
        %v445 = vpop.permute.xlu0 %444
        %446 = vrot.lane.b32.xlu0 %v323, 64
        %v447 = vpop.permute.xlu0 %446
        %448 = vrot.lane.b32.xlu0 %v326, 64
        %v449 = vpop.permute.xlu0 %448
        %450 = vrot.lane.b32.xlu0 %v328, 64
        %v451 = vpop.permute.xlu0 %450
        %452 = vrot.lane.b32.xlu0 %v331, 64
        %v453 = vpop.permute.xlu0 %452
        %454 = vrot.lane.b32.xlu0 %v333, 64
        %v455 = vpop.permute.xlu0 %454
        %472 = vrot.lane.b32.xlu0 %v201, 96
        %v473 = vpop.permute.xlu0 %472
        %474 = vrot.lane.b32.xlu0 %v202, 96
        %v475 = vpop.permute.xlu0 %474
        %476 = vrot.lane.b32.xlu0 %v204, 96
        %v477 = vpop.permute.xlu0 %476
        %478 = vrot.lane.b32.xlu0 %v205, 96
        %v479 = vpop.permute.xlu0 %478
        %480 = vrot.lane.b32.xlu0 %v207, 96
        %v481 = vpop.permute.xlu0 %480
        %482 = vrot.lane.b32.xlu0 %v208, 96
        %v483 = vpop.permute.xlu0 %482
        %484 = vrot.lane.b32.xlu0 %v210, 96
        %v485 = vpop.permute.xlu0 %484
        %486 = vrot.lane.b32.xlu0 %v211, 96
        %v487 = vpop.permute.xlu0 %486
        %488 = vrot.lane.b32.xlu0 %v213, 96
        %v489 = vpop.permute.xlu0 %488
        %490 = vrot.lane.b32.xlu0 %v214, 96
        %v491 = vpop.permute.xlu0 %490
        %492 = vrot.lane.b32.xlu0 %v216, 96
        %v493 = vpop.permute.xlu0 %492
        %494 = vrot.lane.b32.xlu0 %v217, 96
        %v495 = vpop.permute.xlu0 %494
        %496 = vrot.lane.b32.xlu0 %v219, 96
        %v497 = vpop.permute.xlu0 %496
        %498 = vrot.lane.b32.xlu0 %v220, 96
        %v499 = vpop.permute.xlu0 %498
        %500 = vrot.lane.b32.xlu0 %v222, 96
        %v501 = vpop.permute.xlu0 %500
        %502 = vrot.lane.b32.xlu0 %v223, 96
        %v503 = vpop.permute.xlu0 %502
        %520 = vrot.lane.b32.xlu0 %v301, 32
        %v521 = vpop.permute.xlu0 %520
        %522 = vrot.lane.b32.xlu0 %v303, 32
        %v523 = vpop.permute.xlu0 %522
        %524 = vrot.lane.b32.xlu0 %v306, 32
        %v525 = vpop.permute.xlu0 %524
        %526 = vrot.lane.b32.xlu0 %v308, 32
        %v527 = vpop.permute.xlu0 %526
        %528 = vrot.lane.b32.xlu0 %v311, 32
        %v529 = vpop.permute.xlu0 %528
        %530 = vrot.lane.b32.xlu0 %v313, 32
        %v531 = vpop.permute.xlu0 %530
        %532 = vrot.lane.b32.xlu0 %v316, 32
        %v533 = vpop.permute.xlu0 %532
        %534 = vrot.lane.b32.xlu0 %v318, 32
        %v535 = vpop.permute.xlu0 %534
        %536 = vrot.lane.b32.xlu0 %v321, 32
        %v537 = vpop.permute.xlu0 %536
        %538 = vrot.lane.b32.xlu0 %v323, 32
        %v539 = vpop.permute.xlu0 %538
        %540 = vrot.lane.b32.xlu0 %v326, 32
        %v541 = vpop.permute.xlu0 %540
        %542 = vrot.lane.b32.xlu0 %v328, 32
        %v543 = vpop.permute.xlu0 %542
        %544 = vrot.lane.b32.xlu0 %v331, 32
        %v545 = vpop.permute.xlu0 %544
        %546 = vrot.lane.b32.xlu0 %v333, 32
        %v547 = vpop.permute.xlu0 %546
        %548 = vrot.lane.b32.xlu0 %v360, 32
        %v549 = vpop.permute.xlu0 %548
        %550 = vrot.lane.b32.xlu0 %v362, 32
        %v551 = vpop.permute.xlu0 %550
        %568 = vrot.lane.b32.xlu0 %v204, 64
        %v569 = vpop.permute.xlu0 %568
        %570 = vrot.lane.b32.xlu0 %v205, 64
        %v571 = vpop.permute.xlu0 %570
        %572 = vrot.lane.b32.xlu0 %v207, 64
        %v573 = vpop.permute.xlu0 %572
        %574 = vrot.lane.b32.xlu0 %v208, 64
        %v575 = vpop.permute.xlu0 %574
        %576 = vrot.lane.b32.xlu0 %v210, 64
        %v577 = vpop.permute.xlu0 %576
        %578 = vrot.lane.b32.xlu0 %v211, 64
        %v579 = vpop.permute.xlu0 %578
        %580 = vrot.lane.b32.xlu0 %v213, 64
        %v581 = vpop.permute.xlu0 %580
        %582 = vrot.lane.b32.xlu0 %v214, 64
        %v583 = vpop.permute.xlu0 %582
        %584 = vrot.lane.b32.xlu0 %v216, 64
        %v585 = vpop.permute.xlu0 %584
        %586 = vrot.lane.b32.xlu0 %v217, 64
        %v587 = vpop.permute.xlu0 %586
        %588 = vrot.lane.b32.xlu0 %v219, 64
        %v589 = vpop.permute.xlu0 %588
        %590 = vrot.lane.b32.xlu0 %v220, 64
        %v591 = vpop.permute.xlu0 %590
        %592 = vrot.lane.b32.xlu0 %v222, 64
        %v593 = vpop.permute.xlu0 %592
        %594 = vrot.lane.b32.xlu0 %v223, 64
        %v595 = vpop.permute.xlu0 %594
        %596 = vrot.lane.b32.xlu0 %v225, 64
        %v597 = vpop.permute.xlu0 %596
        %598 = vrot.lane.b32.xlu0 %v226, 64
        %v599 = vpop.permute.xlu0 %598
        %616 = vrot.lane.b32.xlu0 %v265, 96
        %v617 = vpop.permute.xlu0 %616
        %618 = vrot.lane.b32.xlu0 %v267, 96
        %v619 = vpop.permute.xlu0 %618
        %620 = vrot.lane.b32.xlu0 %v270, 96
        %v621 = vpop.permute.xlu0 %620
        %622 = vrot.lane.b32.xlu0 %v272, 96
        %v623 = vpop.permute.xlu0 %622
        %624 = vrot.lane.b32.xlu0 %v275, 96
        %v625 = vpop.permute.xlu0 %624
        %626 = vrot.lane.b32.xlu0 %v277, 96
        %v627 = vpop.permute.xlu0 %626
        %628 = vrot.lane.b32.xlu0 %v280, 96
        %v629 = vpop.permute.xlu0 %628
        %630 = vrot.lane.b32.xlu0 %v282, 96
        %v631 = vpop.permute.xlu0 %630
        %632 = vrot.lane.b32.xlu0 %v285, 96
        %v633 = vpop.permute.xlu0 %632
        %634 = vrot.lane.b32.xlu0 %v287, 96
        %v635 = vpop.permute.xlu0 %634
        %636 = vrot.lane.b32.xlu0 %v290, 96
        %v637 = vpop.permute.xlu0 %636
        %638 = vrot.lane.b32.xlu0 %v292, 96
        %v639 = vpop.permute.xlu0 %638
        %640 = vrot.lane.b32.xlu0 %v339, 96
        %v641 = vpop.permute.xlu0 %640
        %642 = vrot.lane.b32.xlu0 %v341, 96
        %v643 = vpop.permute.xlu0 %642
        %644 = vrot.lane.b32.xlu0 %v368, 96
        %v645 = vpop.permute.xlu0 %644
        %646 = vrot.lane.b32.xlu0 %v370, 96
        %v647 = vpop.permute.xlu0 %646
        %vm664 = vcmask 261120
        %v665 = vsel %vm664, %v198, %v377
        %v666 = vsel %vm664, %v199, %v379
        %v667 = vsel %vm664, %v201, %v381
        %v668 = vsel %vm664, %v202, %v383
        %v669 = vsel %vm664, %v204, %v385
        %v670 = vsel %vm664, %v205, %v387
        %v671 = vsel %vm664, %v207, %v389
        %v672 = vsel %vm664, %v208, %v391
        %v673 = vsel %vm664, %v210, %v393
        %v674 = vsel %vm664, %v211, %v395
        %v675 = vsel %vm664, %v213, %v397
        %v676 = vsel %vm664, %v214, %v399
        %v677 = vsel %vm664, %v216, %v401
        %v678 = vsel %vm664, %v217, %v403
        %v679 = vsel %vm664, %v219, %v405
        %v680 = vsel %vm664, %v220, %v407
        %vm681 = vcmask 523264
        %v682 = vsel %vm681, %v665, %v425
        %v683 = vsel %vm681, %v666, %v427
        %v684 = vsel %vm681, %v667, %v429
        %v685 = vsel %vm681, %v668, %v431
        %v686 = vsel %vm681, %v669, %v433
        %v687 = vsel %vm681, %v670, %v435
        %v688 = vsel %vm681, %v671, %v437
        %v689 = vsel %vm681, %v672, %v439
        %v690 = vsel %vm681, %v673, %v441
        %v691 = vsel %vm681, %v674, %v443
        %v692 = vsel %vm681, %v675, %v445
        %v693 = vsel %vm681, %v676, %v447
        %v694 = vsel %vm681, %v677, %v449
        %v695 = vsel %vm681, %v678, %v451
        %v696 = vsel %vm681, %v679, %v453
        %v697 = vsel %vm681, %v680, %v455
        %vm698 = vcmask 785408
        %v699 = vsel %vm698, %v682, %v473
        %v700 = vsel %vm698, %v683, %v475
        %v701 = vsel %vm698, %v684, %v477
        %v702 = vsel %vm698, %v685, %v479
        %v703 = vsel %vm698, %v686, %v481
        %v704 = vsel %vm698, %v687, %v483
        %v705 = vsel %vm698, %v688, %v485
        %v706 = vsel %vm698, %v689, %v487
        %v707 = vsel %vm698, %v690, %v489
        %v708 = vsel %vm698, %v691, %v491
        %v709 = vsel %vm698, %v692, %v493
        %v710 = vsel %vm698, %v693, %v495
        %v711 = vsel %vm698, %v694, %v497
        %v712 = vsel %vm698, %v695, %v499
        %v713 = vsel %vm698, %v696, %v501
        %v714 = vsel %vm698, %v697, %v503
        %v715 = vsel %vm664, %v260, %v521
        %v716 = vsel %vm664, %v262, %v523
        %v717 = vsel %vm664, %v265, %v525
        %v718 = vsel %vm664, %v267, %v527
        %v719 = vsel %vm664, %v270, %v529
        %v720 = vsel %vm664, %v272, %v531
        %v721 = vsel %vm664, %v275, %v533
        %v722 = vsel %vm664, %v277, %v535
        %v723 = vsel %vm664, %v280, %v537
        %v724 = vsel %vm664, %v282, %v539
        %v725 = vsel %vm664, %v285, %v541
        %v726 = vsel %vm664, %v287, %v543
        %v727 = vsel %vm664, %v290, %v545
        %v728 = vsel %vm664, %v292, %v547
        %v729 = vsel %vm664, %v339, %v549
        %v730 = vsel %vm664, %v341, %v551
        %v731 = vsel %vm681, %v715, %v569
        %v732 = vsel %vm681, %v716, %v571
        %v733 = vsel %vm681, %v717, %v573
        %v734 = vsel %vm681, %v718, %v575
        %v735 = vsel %vm681, %v719, %v577
        %v736 = vsel %vm681, %v720, %v579
        %v737 = vsel %vm681, %v721, %v581
        %v738 = vsel %vm681, %v722, %v583
        %v739 = vsel %vm681, %v723, %v585
        %v740 = vsel %vm681, %v724, %v587
        %v741 = vsel %vm681, %v725, %v589
        %v742 = vsel %vm681, %v726, %v591
        %v743 = vsel %vm681, %v727, %v593
        %v744 = vsel %vm681, %v728, %v595
        %v745 = vsel %vm681, %v729, %v597
        %v746 = vsel %vm681, %v730, %v599
        %v747 = vsel %vm698, %v731, %v617
        %v748 = vsel %vm698, %v732, %v619
        %v749 = vsel %vm698, %v733, %v621
        %v750 = vsel %vm698, %v734, %v623
        %v751 = vsel %vm698, %v735, %v625
        %v752 = vsel %vm698, %v736, %v627
        %v753 = vsel %vm698, %v737, %v629
        %v754 = vsel %vm698, %v738, %v631
        %v755 = vsel %vm698, %v739, %v633
        %v756 = vsel %vm698, %v740, %v635
        %v757 = vsel %vm698, %v741, %v637
        %v758 = vsel %vm698, %v742, %v639
        %v759 = vsel %vm698, %v743, %v641
        %v760 = vsel %vm698, %v744, %v643
        %v761 = vsel %vm698, %v745, %v645
        %v762 = vsel %vm698, %v746, %v647
        %v763 = vld [vmem:[%s1] sm:$0xff]
        %v764 = vld [vmem:[%s1 + $0x8] sm:$0xff]
        %v765 = vld [vmem:[%s1 + $0x10] sm:$0xff]
        %v766 = vld [vmem:[%s1 + $0x18] sm:$0xff]
        %v767 = vld [vmem:[%s1 + $0x20] sm:$0xff]
        %v768 = vld [vmem:[%s1 + $0x28] sm:$0xff]
        %v769 = vld [vmem:[%s1 + $0x30] sm:$0xff]
        %v770 = vld [vmem:[%s1 + $0x38] sm:$0xff]
        %v771 = vld [vmem:[%s1 + $0x40] sm:$0xff]
        %v772 = vld [vmem:[%s1 + $0x48] sm:$0xff]
        %v773 = vld [vmem:[%s1 + $0x50] sm:$0xff]
        %v774 = vld [vmem:[%s1 + $0x58] sm:$0xff]
        %v775 = vld [vmem:[%s1 + $0x60] sm:$0xff]
        %v776 = vld [vmem:[%s1 + $0x68] sm:$0xff]
        %v777 = vld [vmem:[%s1 + $0x70] sm:$0xff]
        %v778 = vld [vmem:[%s1 + $0x78] sm:$0xff]
        %v779 = vld [vmem:[%s1 + $0x80] sm:$0xff]
        %v780 = vld [vmem:[%s1 + $0x88] sm:$0xff]
        %v781 = vld [vmem:[%s1 + $0x90] sm:$0xff]
        %v782 = vld [vmem:[%s1 + $0x98] sm:$0xff]
        %v783 = vld [vmem:[%s1 + $0xa0] sm:$0xff]
        %v784 = vld [vmem:[%s1 + $0xa8] sm:$0xff]
        %v785 = vld [vmem:[%s1 + $0xb0] sm:$0xff]
        %v786 = vld [vmem:[%s1 + $0xb8] sm:$0xff]
        %v787 = vld [vmem:[%s1 + $0xc0] sm:$0xff]
        %v788 = vld [vmem:[%s1 + $0xc8] sm:$0xff]
        %v789 = vld [vmem:[%s1 + $0xd0] sm:$0xff]
        %v790 = vld [vmem:[%s1 + $0xd8] sm:$0xff]
        %v791 = vld [vmem:[%s1 + $0xe0] sm:$0xff]
        %v792 = vld [vmem:[%s1 + $0xe8] sm:$0xff]
        %v793 = vld [vmem:[%s1 + $0xf0] sm:$0xff]
        %v794 = vld [vmem:[%s1 + $0xf8] sm:$0xff]
        %v795 = vld [vmem:[%s1 + $0x100] sm:$0xff]
        %v796 = vld [vmem:[%s1 + $0x108] sm:$0xff]
        %v797 = vld [vmem:[%s1 + $0x110] sm:$0xff]
        %v798 = vld [vmem:[%s1 + $0x118] sm:$0xff]
        %v799 = vld [vmem:[%s2] sm:$0x1]
        %v801 = vlaneseq
        %v802 = vshrl.u32 %v801, 7
        %v803 = vsub.s32 0, %v802
        %v804 = vrot.slane %v799, %v803
        %v806 = vsel %vm664, %v306, 0
        %v808 = vsel %vm664, %v308, 0
        %v810 = vsel %vm664, %v311, 0
        %v812 = vsel %vm664, %v313, 0
        %v814 = vsel %vm664, %v316, 0
        %v816 = vsel %vm664, %v318, 0
        %v818 = vsel %vm664, %v321, 0
        %v820 = vsel %vm664, %v323, 0
        %v822 = vsel %vm664, %v326, 0
        %v824 = vsel %vm664, %v328, 0
        %v826 = vsel %vm664, %v331, 0
        %v828 = vsel %vm664, %v333, 0
        %v830 = vsel %vm664, %v360, 0
        %v832 = vsel %vm664, %v362, 0
        %v834 = vsel %vm664, %v373, 0
        %v836 = vsel %vm664, %v375, 0
        %838 = vmatprep.subr.mxu0 0.0
        %839 = vmatpush1.msra.mxu0 %v778
        %840 = vmatprep.subr.mxu0 0.0
        %841 = vmatpush1.msra.mxu0 %v777
        %842 = vmatprep.subr.mxu0 0.0
        %843 = vmatpush1.msra.mxu0 %v776
        %844 = vmatprep.subr.mxu0 0.0
        %845 = vmatpush1.msra.mxu0 %v775
        %846 = vmatprep.subr.mxu0 0.0
        %847 = vmatpush1.msra.mxu0 %v774
        %848 = vmatprep.subr.mxu0 0.0
        %849 = vmatpush1.msra.mxu0 %v773
        %850 = vmatprep.subr.mxu0 0.0
        %851 = vmatpush1.msra.mxu0 %v772
        %852 = vmatprep.subr.mxu0 0.0
        %853 = vmatpush1.msra.mxu0 %v771
        %854 = vmatprep.subr.mxu0 0.0
        %855 = vmatpush1.msra.mxu0 %v770
        %856 = vmatprep.subr.mxu0 0.0
        %857 = vmatpush1.msra.mxu0 %v769
        %858 = vmatprep.subr.mxu0 0.0
        %859 = vmatpush1.msra.mxu0 %v768
        %860 = vmatprep.subr.mxu0 0.0
        %861 = vmatpush1.msra.mxu0 %v767
        %862 = vmatprep.subr.mxu0 0.0
        %863 = vmatpush1.msra.mxu0 %v766
        %864 = vmatprep.subr.mxu0 0.0
        %865 = vmatpush1.msra.mxu0 %v765
        %866 = vmatprep.subr.mxu0 0.0
        %867 = vmatpush1.msra.mxu0 %v764
        %868 = vmatprep.subr.mxu0 0.0
        %869 = vmatpush1.msra.mxu0 %v763
        %870 = vmatprep.subr.mxu0 0.0
        %871 = vmatpush2.msra.mxu0 %v794
        %872 = vmatprep.subr.mxu0 0.0
        %873 = vmatpush2.msra.mxu0 %v793
        %874 = vmatprep.subr.mxu0 0.0
        %875 = vmatpush2.msra.mxu0 %v792
        %876 = vmatprep.subr.mxu0 0.0
        %877 = vmatpush2.msra.mxu0 %v791
        %878 = vmatprep.subr.mxu0 0.0
        %879 = vmatpush2.msra.mxu0 %v790
        %880 = vmatprep.subr.mxu0 0.0
        %881 = vmatpush2.msra.mxu0 %v789
        %882 = vmatprep.subr.mxu0 0.0
        %883 = vmatpush2.msra.mxu0 %v788
        %884 = vmatprep.subr.mxu0 0.0
        %885 = vmatpush2.msra.mxu0 %v787
        %886 = vmatprep.subr.mxu0 0.0
        %887 = vmatpush2.msra.mxu0 %v786
        %888 = vmatprep.subr.mxu0 0.0
        %889 = vmatpush2.msra.mxu0 %v785
        %890 = vmatprep.subr.mxu0 0.0
        %891 = vmatpush2.msra.mxu0 %v784
        %892 = vmatprep.subr.mxu0 0.0
        %893 = vmatpush2.msra.mxu0 %v783
        %894 = vmatprep.subr.mxu0 0.0
        %895 = vmatpush2.msra.mxu0 %v782
        %896 = vmatprep.subr.mxu0 0.0
        %897 = vmatpush2.msra.mxu0 %v781
        %898 = vmatprep.subr.mxu0 0.0
        %899 = vmatpush2.msra.mxu0 %v780
        %900 = vmatprep.subr.mxu0 0.0
        %901 = vmatpush2.msra.mxu0 %v779
        %902 = vmatprep.mubr.f32.mxu0 %v747
        %903 = vmatmul.mubr.f32.gmra.mxu0 %v699
        %v904 = vpop.f32.mrf.mxu0
        %v905 = vadd.f32 %v804, %v904
        %v906 = vpop.f32.mrf.mxu0
        %907 = vmatprep.mubr.f32.mxu0 %v748
        %908 = vmatmul.mubr.f32.gmra.mxu0 %v700
        %v909 = vpop.f32.mrf.mxu0
        %v910 = vadd.f32 %v804, %v909
        %v911 = vpop.f32.mrf.mxu0
        %912 = vmatprep.mubr.f32.mxu0 %v749
        %913 = vmatmul.mubr.f32.gmra.mxu0 %v701
        %v914 = vpop.f32.mrf.mxu0
        %v915 = vadd.f32 %v804, %v914
        %v916 = vpop.f32.mrf.mxu0
        %917 = vmatprep.mubr.f32.mxu0 %v750
        %918 = vmatmul.mubr.f32.gmra.mxu0 %v702
        %v919 = vpop.f32.mrf.mxu0
        %v920 = vadd.f32 %v804, %v919
        %v921 = vpop.f32.mrf.mxu0
        %922 = vmatprep.mubr.f32.mxu0 %v751
        %923 = vmatmul.mubr.f32.gmra.mxu0 %v703
        %v924 = vpop.f32.mrf.mxu0
        %v925 = vadd.f32 %v804, %v924
        %v926 = vpop.f32.mrf.mxu0
        %927 = vmatprep.mubr.f32.mxu0 %v752
        %928 = vmatmul.mubr.f32.gmra.mxu0 %v704
        %v929 = vpop.f32.mrf.mxu0
        %v930 = vadd.f32 %v804, %v929
        %v931 = vpop.f32.mrf.mxu0
        %932 = vmatprep.mubr.f32.mxu0 %v753
        %933 = vmatmul.mubr.f32.gmra.mxu0 %v705
        %v934 = vpop.f32.mrf.mxu0
        %v935 = vadd.f32 %v804, %v934
        %v936 = vpop.f32.mrf.mxu0
        %937 = vmatprep.mubr.f32.mxu0 %v754
        %938 = vmatmul.mubr.f32.gmra.mxu0 %v706
        %v939 = vpop.f32.mrf.mxu0
        %v940 = vadd.f32 %v804, %v939
        %v941 = vpop.f32.mrf.mxu0
        %942 = vmatprep.mubr.f32.mxu0 %v755
        %943 = vmatmul.mubr.f32.gmra.mxu0 %v707
        %v944 = vpop.f32.mrf.mxu0
        %v945 = vadd.f32 %v804, %v944
        %v946 = vpop.f32.mrf.mxu0
        %947 = vmatprep.mubr.f32.mxu0 %v756
        %948 = vmatmul.mubr.f32.gmra.mxu0 %v708
        %v949 = vpop.f32.mrf.mxu0
        %v950 = vadd.f32 %v804, %v949
        %v951 = vpop.f32.mrf.mxu0
        %952 = vmatprep.mubr.f32.mxu0 %v757
        %953 = vmatmul.mubr.f32.gmra.mxu0 %v709
        %v954 = vpop.f32.mrf.mxu0
        %v955 = vadd.f32 %v804, %v954
        %v956 = vpop.f32.mrf.mxu0
        %957 = vmatprep.mubr.f32.mxu0 %v758
        %958 = vmatmul.mubr.f32.gmra.mxu0 %v710
        %v959 = vpop.f32.mrf.mxu0
        %v960 = vadd.f32 %v804, %v959
        %v961 = vpop.f32.mrf.mxu0
        %962 = vmatprep.mubr.f32.mxu0 %v759
        %963 = vmatmul.mubr.f32.gmra.mxu0 %v711
        %v964 = vpop.f32.mrf.mxu0
        %v965 = vadd.f32 %v804, %v964
        %v966 = vpop.f32.mrf.mxu0
        %967 = vmatprep.mubr.f32.mxu0 %v760
        %968 = vmatmul.mubr.f32.gmra.mxu0 %v712
        %v969 = vpop.f32.mrf.mxu0
        %v970 = vadd.f32 %v804, %v969
        %v971 = vpop.f32.mrf.mxu0
        %972 = vmatprep.mubr.f32.mxu0 %v761
        %973 = vmatmul.mubr.f32.gmra.mxu0 %v713
        %v974 = vpop.f32.mrf.mxu0
        %v975 = vadd.f32 %v804, %v974
        %v976 = vpop.f32.mrf.mxu0
        %977 = vmatprep.mubr.f32.mxu0 %v762
        %978 = vmatmul.mubr.f32.gmra.mxu0 %v714
        %v979 = vpop.f32.mrf.mxu0
        %v980 = vadd.f32 %v804, %v979
        %v981 = vpop.f32.mrf.mxu0
        %982 = vdwg.mxu0
        %983 = vmatprep.subr.mxu0 0.0
        %984 = vmatpush1.msra.mxu0 0.0
        %985 = vmatprep.subr.mxu0 0.0
        %986 = vmatpush1.msra.mxu0 0.0
        %987 = vmatprep.subr.mxu0 0.0
        %988 = vmatpush1.msra.mxu0 0.0
        %989 = vmatprep.subr.mxu0 0.0
        %990 = vmatpush1.msra.mxu0 0.0
        %991 = vmatprep.subr.mxu0 0.0
        %992 = vmatpush1.msra.mxu0 0.0
        %993 = vmatprep.subr.mxu0 0.0
        %994 = vmatpush1.msra.mxu0 0.0
        %995 = vmatprep.subr.mxu0 0.0
        %996 = vmatpush1.msra.mxu0 0.0
        %997 = vmatprep.subr.mxu0 0.0
        %998 = vmatpush1.msra.mxu0 0.0
        %999 = vmatprep.subr.mxu0 0.0
        %1000 = vmatpush1.msra.mxu0 0.0
        %1001 = vmatprep.subr.mxu0 0.0
        %1002 = vmatpush1.msra.mxu0 0.0
        %1003 = vmatprep.subr.mxu0 0.0
        %1004 = vmatpush1.msra.mxu0 0.0
        %1005 = vmatprep.subr.mxu0 0.0
        %1006 = vmatpush1.msra.mxu0 0.0
        %1007 = vmatprep.subr.mxu0 0.0
        %1008 = vmatpush1.msra.mxu0 %v798
        %1009 = vmatprep.subr.mxu0 0.0
        %1010 = vmatpush1.msra.mxu0 %v797
        %1011 = vmatprep.subr.mxu0 0.0
        %1012 = vmatpush1.msra.mxu0 %v796
        %1013 = vmatprep.subr.mxu0 0.0
        %1014 = vmatpush1.msra.mxu0 %v795
        %1015 = vmatprep.subr.mxu0 0.0
        %1016 = vmatpush2.msra.mxu0 0.0
        %1017 = vmatprep.subr.mxu0 0.0
        %1018 = vmatpush2.msra.mxu0 0.0
        %1019 = vmatprep.subr.mxu0 0.0
        %1020 = vmatpush2.msra.mxu0 0.0
        %1021 = vmatprep.subr.mxu0 0.0
        %1022 = vmatpush2.msra.mxu0 0.0
        %1023 = vmatprep.subr.mxu0 0.0
        %1024 = vmatpush2.msra.mxu0 0.0
        %1025 = vmatprep.subr.mxu0 0.0
        %1026 = vmatpush2.msra.mxu0 0.0
        %1027 = vmatprep.subr.mxu0 0.0
        %1028 = vmatpush2.msra.mxu0 0.0
        %1029 = vmatprep.subr.mxu0 0.0
        %1030 = vmatpush2.msra.mxu0 0.0
        %1031 = vmatprep.subr.mxu0 0.0
        %1032 = vmatpush2.msra.mxu0 0.0
        %1033 = vmatprep.subr.mxu0 0.0
        %1034 = vmatpush2.msra.mxu0 0.0
        %1035 = vmatprep.subr.mxu0 0.0
        %1036 = vmatpush2.msra.mxu0 0.0
        %1037 = vmatprep.subr.mxu0 0.0
        %1038 = vmatpush2.msra.mxu0 0.0
        %1039 = vmatprep.subr.mxu0 0.0
        %1040 = vmatpush2.msra.mxu0 0.0
        %1041 = vmatprep.subr.mxu0 0.0
        %1042 = vmatpush2.msra.mxu0 0.0
        %1043 = vmatprep.subr.mxu0 0.0
        %1044 = vmatpush2.msra.mxu0 0.0
        %1045 = vmatprep.subr.mxu0 0.0
        %1046 = vmatpush2.msra.mxu0 0.0
        %1047 = vmatprep.mubr.f32.mxu0 0.0
        %1048 = vmatmul.mubr.f32.gmra.mxu0 %v806
        %v1049 = vpop.f32.mrf.mxu0
        %v1050 = vadd.f32 %v905, %v1049
        %v1051 = vpop.f32.mrf.mxu0
        %1052 = vmatprep.mubr.f32.mxu0 0.0
        %1053 = vmatmul.mubr.f32.gmra.mxu0 %v808
        %v1054 = vpop.f32.mrf.mxu0
        %v1055 = vadd.f32 %v910, %v1054
        %v1056 = vpop.f32.mrf.mxu0
        %1057 = vmatprep.mubr.f32.mxu0 0.0
        %1058 = vmatmul.mubr.f32.gmra.mxu0 %v810
        %v1059 = vpop.f32.mrf.mxu0
        %v1060 = vadd.f32 %v915, %v1059
        %v1061 = vpop.f32.mrf.mxu0
        %1062 = vmatprep.mubr.f32.mxu0 0.0
        %1063 = vmatmul.mubr.f32.gmra.mxu0 %v812
        %v1064 = vpop.f32.mrf.mxu0
        %v1065 = vadd.f32 %v920, %v1064
        %v1066 = vpop.f32.mrf.mxu0
        %1067 = vmatprep.mubr.f32.mxu0 0.0
        %1068 = vmatmul.mubr.f32.gmra.mxu0 %v814
        %v1069 = vpop.f32.mrf.mxu0
        %v1070 = vadd.f32 %v925, %v1069
        %v1071 = vpop.f32.mrf.mxu0
        %1072 = vmatprep.mubr.f32.mxu0 0.0
        %1073 = vmatmul.mubr.f32.gmra.mxu0 %v816
        %v1074 = vpop.f32.mrf.mxu0
        %v1075 = vadd.f32 %v930, %v1074
        %v1076 = vpop.f32.mrf.mxu0
        %1077 = vmatprep.mubr.f32.mxu0 0.0
        %1078 = vmatmul.mubr.f32.gmra.mxu0 %v818
        %v1079 = vpop.f32.mrf.mxu0
        %v1080 = vadd.f32 %v935, %v1079
        %v1081 = vpop.f32.mrf.mxu0
        %1082 = vmatprep.mubr.f32.mxu0 0.0
        %1083 = vmatmul.mubr.f32.gmra.mxu0 %v820
        %v1084 = vpop.f32.mrf.mxu0
        %v1085 = vadd.f32 %v940, %v1084
        %v1086 = vpop.f32.mrf.mxu0
        %1087 = vmatprep.mubr.f32.mxu0 0.0
        %1088 = vmatmul.mubr.f32.gmra.mxu0 %v822
        %v1089 = vpop.f32.mrf.mxu0
        %v1090 = vadd.f32 %v945, %v1089
        %v1091 = vpop.f32.mrf.mxu0
        %1092 = vmatprep.mubr.f32.mxu0 0.0
        %1093 = vmatmul.mubr.f32.gmra.mxu0 %v824
        %v1094 = vpop.f32.mrf.mxu0
        %v1095 = vadd.f32 %v950, %v1094
        %v1096 = vpop.f32.mrf.mxu0
        %1097 = vmatprep.mubr.f32.mxu0 0.0
        %1098 = vmatmul.mubr.f32.gmra.mxu0 %v826
        %v1099 = vpop.f32.mrf.mxu0
        %v1100 = vadd.f32 %v955, %v1099
        %v1101 = vpop.f32.mrf.mxu0
        %1102 = vmatprep.mubr.f32.mxu0 0.0
        %1103 = vmatmul.mubr.f32.gmra.mxu0 %v828
        %v1104 = vpop.f32.mrf.mxu0
        %v1105 = vadd.f32 %v960, %v1104
        %v1106 = vpop.f32.mrf.mxu0
        %1107 = vmatprep.mubr.f32.mxu0 0.0
        %1108 = vmatmul.mubr.f32.gmra.mxu0 %v830
        %v1109 = vpop.f32.mrf.mxu0
        %v1110 = vadd.f32 %v965, %v1109
        %v1111 = vpop.f32.mrf.mxu0
        %1112 = vmatprep.mubr.f32.mxu0 0.0
        %1113 = vmatmul.mubr.f32.gmra.mxu0 %v832
        %v1114 = vpop.f32.mrf.mxu0
        %v1115 = vadd.f32 %v970, %v1114
        %v1116 = vpop.f32.mrf.mxu0
        %1117 = vmatprep.mubr.f32.mxu0 0.0
        %1118 = vmatmul.mubr.f32.gmra.mxu0 %v834
        %v1119 = vpop.f32.mrf.mxu0
        %v1120 = vadd.f32 %v975, %v1119
        %v1121 = vpop.f32.mrf.mxu0
        %1122 = vmatprep.mubr.f32.mxu0 0.0
        %1123 = vmatmul.mubr.f32.gmra.mxu0 %v836
        %v1124 = vpop.f32.mrf.mxu0
        %v1125 = vadd.f32 %v980, %v1124
        %v1126 = vpop.f32.mrf.mxu0
        %1127 = vdwg.mxu0
        %1128 = vst.msk [vmem:[%s187] sm:$0xff] %vm664, %v1050
        %1129 = vst.msk [vmem:[%s187 + $0x8] sm:$0xff] %vm664, %v1055
        %1130 = vst.msk [vmem:[%s187 + $0x10] sm:$0xff] %vm664, %v1060
        %1131 = vst.msk [vmem:[%s187 + $0x18] sm:$0xff] %vm664, %v1065
        %1132 = vst.msk [vmem:[%s187 + $0x20] sm:$0xff] %vm664, %v1070
        %1133 = vst.msk [vmem:[%s187 + $0x28] sm:$0xff] %vm664, %v1075
        %1134 = vst.msk [vmem:[%s187 + $0x30] sm:$0xff] %vm664, %v1080
        %1135 = vst.msk [vmem:[%s187 + $0x38] sm:$0xff] %vm664, %v1085
        %1136 = vst.msk [vmem:[%s187 + $0x40] sm:$0xff] %vm664, %v1090
        %1137 = vst.msk [vmem:[%s187 + $0x48] sm:$0xff] %vm664, %v1095
        %1138 = vst.msk [vmem:[%s187 + $0x50] sm:$0xff] %vm664, %v1100
        %1139 = vst.msk [vmem:[%s187 + $0x58] sm:$0xff] %vm664, %v1105
        %1140 = vst.msk [vmem:[%s187 + $0x60] sm:$0xff] %vm664, %v1110
        %1141 = vst.msk [vmem:[%s187 + $0x68] sm:$0xff] %vm664, %v1115
        %1142 = vst.msk [vmem:[%s187 + $0x70] sm:$0xff] %vm664, %v1120
        %1143 = vst.msk [vmem:[%s187 + $0x78] sm:$0xff] %vm664, %v1125
        %s1144 = sand.u32 %s109, 1
        %s1145 = scalar_lea.sflag [#allocation3], %s1144
        %s1146 = sand.u32 %s109, 1
        %s1147 = smul.addr %s1146, 128
        %s1148 = scalar_lea.vmem [#allocation2], %s1147
        // Predicated region
        $region33: #{conv_layer_forward.1} parent=31 // pred_check
          %p1149 = pneg %p119
        $region34: #{conv_layer_forward.1} parent=31 // pred_check_branch
          %1151 = sbr.rel (%p1149) target = $region36
        $region35: #{conv_layer_forward.1} parent=31 // pred_region
          %s1152 = smul.u32 8, %s22
          %s1154 = ssub.s32 2048, 2048
          %1155 = vsyncadd %s1145, %s1154
          %s1156 = smul.addr %s1152, 2
          %s1157 = smul.addr %s21, 32
          %s1158 = sadd.s32 %s1156, %s1157
          %s1159 = smul.addr %s1158, 128
          %s1160 = scalar_lea.hbm %s3, %s1159
          %s1161 = sshll.u32 %s1148, 4
          %s1162 = int_to_ptr.vmem [resolvable:$true] %s1161
          %1167 = dma.vmem_to_hbm [thread:$0]  %s1162, 2048, %s1160, %s1145, 128, 128, 8
        $region36: #{conv_layer_forward.1} parent=31 // pred_fallthru
          _
      $region32: #{conv_layer_forward.1} parent=5 // pred_fallthru
        _
      %p1168 = scmp.le.s32.totalorder 2, %s12
      // Predicated region
      $region37: #{conv_layer_forward.1} parent=5 // pred_check
        %p1169 = pneg %p1168
      $region38: #{conv_layer_forward.1} parent=5 // pred_check_branch
        %1171 = sbr.rel (%p1169) target = $region40
      $region39: #{conv_layer_forward.1} parent=5 // pred_region
        %s1172 = ssub.s32 %s12, 2
        // Predicated region
        $region41: #{conv_layer_forward.1} parent=39 // pred_check
          %p1173 = pneg %p125
        $region42: #{conv_layer_forward.1} parent=39 // pred_check_branch
          %1175 = sbr.rel (%p1173) target = $region44
        $region43: #{conv_layer_forward.1} parent=39 // pred_region
          %s1176 = sand.u32 %s110, 1
          %s1177 = scalar_lea.sflag [#allocation3], %s1176
          %s1178 = sand.u32 %s110, 1
          %s1179 = smul.addr %s1178, 128
          %s1180 = scalar_lea.vmem [#allocation2], %s1179
          %1181 = dma.done %s1177, 2048
        $region44: #{conv_layer_forward.1} parent=39 // pred_fallthru
          _
      $region40: #{conv_layer_forward.1} parent=5 // pred_fallthru
        _
    $region6: #{conv_layer_forward.1} parent=1 // loop_footer
      %s16 = sadd.s32 1, %s12
    $region7: #{conv_layer_forward.1} parent=1 // loop_footer_branch
      %11 = sbr.rel target = $region3
    $region8: #{conv_layer_forward.1} parent=1 // loop_exit
      _
    %1182 = vsyncpa [#allocation3], 1
    %s1183 = scalar_lea.sflag [#allocation3], 1
    %1184 = vsyncpa %s1183, 1

</llo_original>
